<compile_context>
chip_gen: v7x
topology: tpu7x:2x2x1
jax: 0.10.0
libtpu: 0.0.40
codegen_flags: <defaults>
</compile_context>

<pallas_src>
import jax
import jax.numpy as jnp
from jax.experimental import pallas as pl
from jax.experimental.pallas import tpu as pltpu

# Fixed B-spline kernel (matches the PyTorch module), normalized by its sum=76:
#   [-3 12  17 12 -3]
#   [ 0 -5 -20 -5  0]
#   [ 4 16  26 16  4]
#   [ 0 -5 -20 -5  0]
#   [-3 12  17 12 -3]
_KSUM = 76.0
# Unique non-zero weights, grouped by the (|row-2|, |col-2|) symmetry:
_W_R0_C0 = -3.0 / _KSUM   # rows {0,4}, cols {0,4}
_W_R0_C1 = 12.0 / _KSUM   # rows {0,4}, cols {1,3}
_W_R0_C2 = 17.0 / _KSUM   # rows {0,4}, col 2
_W_R1_C1 = -5.0 / _KSUM   # rows {1,3}, cols {1,3}
_W_R1_C2 = -20.0 / _KSUM  # rows {1,3}, col 2
_W_R2_C0 = 4.0 / _KSUM    # row 2,     cols {0,4}
_W_R2_C1 = 16.0 / _KSUM   # row 2,     cols {1,3}
_W_R2_C2 = 26.0 / _KSUM   # row 2,     col 2
# (rows {1,3}, cols {0,4} have weight 0 and are skipped entirely.)

# Per-block VMEM budget used to size TBC (covers double-buffered in/out,
# padded scratch and the stencil temporaries).  Conservative enough for the
# tighter v7x VMEM while still giving large blocks.
_VMEM_BLOCK_BUDGET = 16 * 1024 * 1024
_VMEM_LIMIT_BYTES = 48 * 1024 * 1024


def _bspline_conv_kernel(x_ref, o_ref, xp_ref):
    """One grid step smooths a block of TBC (batch*channel) images.

    x_ref : (TBC, H, W)      unpadded input block (VMEM)
    o_ref : (TBC, H, W)      output block (VMEM)
    xp_ref: (TBC, H+4, W+4)  zero-bordered padded scratch (VMEM)
    """
    TBC, H, W = o_ref.shape

    # Re-zero only the 2-wide border each step (cheap vs. the stencil and safe
    # under megacore sharding of the parallel grid axis), then drop the block
    # into the centre.  The padded image never touches HBM.
    zrow = jnp.zeros((TBC, 2, W + 4), jnp.float32)
    zcol = jnp.zeros((TBC, H + 4, 2), jnp.float32)
    xp_ref[:, 0:2, :] = zrow
    xp_ref[:, H + 2:H + 4, :] = zrow
    xp_ref[:, :, 0:2] = zcol
    xp_ref[:, :, W + 2:W + 4] = zcol
    xp_ref[:, 2:2 + H, 2:2 + W] = x_ref[...]

    xp = xp_ref[...]  # (TBC, H+4, W+4), float32

    # Hoisted lane-axis (W) shifts, left/right symmetry folded:
    # column groups, each (TBC, H+4, W).
    c0 = xp[:, :, 0:W] + xp[:, :, 4:4 + W]       # |dj-2| == 2
    c1 = xp[:, :, 1:1 + W] + xp[:, :, 3:3 + W]   # |dj-2| == 1
    c2 = xp[:, :, 2:2 + W]                       # dj == 2

    # Row (sublane) offsets with top/bottom symmetry folded -> 8 unique terms.
    r0c0 = c0[:, 0:H] + c0[:, 4:4 + H]
    r0c1 = c1[:, 0:H] + c1[:, 4:4 + H]
    r0c2 = c2[:, 0:H] + c2[:, 4:4 + H]
    r1c1 = c1[:, 1:1 + H] + c1[:, 3:3 + H]
    r1c2 = c2[:, 1:1 + H] + c2[:, 3:3 + H]
    r2c0 = c0[:, 2:2 + H]
    r2c1 = c1[:, 2:2 + H]
    r2c2 = c2[:, 2:2 + H]

    acc = (_W_R0_C0 * r0c0 + _W_R0_C1 * r0c1 + _W_R0_C2 * r0c2
           + _W_R1_C1 * r1c1 + _W_R1_C2 * r1c2
           + _W_R2_C0 * r2c0 + _W_R2_C1 * r2c1 + _W_R2_C2 * r2c2)

    o_ref[...] = acc.astype(o_ref.dtype)


def _pick_tbc(bc, h, w):
    """Images per block: as many as the VMEM budget allows, but keep the
    (parallel) grid >= 2 steps (both v7x TensorCores busy) and keep TBC an
    exact divisor of B*C (uniform blocks, no remainder handling)."""
    per_image = 4 * (4 * h * w             # double-buffered input + output
                     + (h + 4) * (w + 4)   # padded scratch
                     + 6 * (h + 4) * w)    # column/row-group temporaries
    cap = max(1, _VMEM_BLOCK_BUDGET // per_image)
    cap = min(cap, bc)
    if bc >= 2:
        cap = min(cap, bc // 2)
    tbc = 1
    for d in range(1, cap + 1):
        if bc % d == 0:
            tbc = d
    return tbc


def bspline_filter(flow):
    """Pallas equivalent of BSplineFilter.forward.

    flow: (B, 2, H, W) -> (B, 2, H, W); each channel smoothed with the fixed
    5x5 B-spline kernel, padding=2 ('same').
    """
    B, C, H, W = flow.shape
    assert C == 2, "BSplineFilter expects a 2-channel flow field"
    orig_dtype = flow.dtype

    bc = B * C
    x = flow.astype(jnp.float32).reshape(bc, H, W)
    tbc = _pick_tbc(bc, H, W)

    out = pl.pallas_call(
        _bspline_conv_kernel,
        out_shape=jax.ShapeDtypeStruct((bc, H, W), jnp.float32),
        grid_spec=pltpu.PrefetchScalarGridSpec(
            num_scalar_prefetch=0,
            grid=(bc // tbc,),
            in_specs=[
                # Last two dims equal the full array extents -> no (8,128)
                # divisibility constraint even for small H, W.
                pl.BlockSpec((tbc, H, W), lambda i: (i, 0, 0)),
            ],
            out_specs=pl.BlockSpec((tbc, H, W), lambda i: (i, 0, 0)),
            scratch_shapes=[pltpu.VMEM((tbc, H + 4, W + 4), jnp.float32)],
        ),
        compiler_params=pltpu.CompilerParams(
            dimension_semantics=("parallel",),
            vmem_limit_bytes=_VMEM_LIMIT_BYTES,
        ),
    )(x)

    return out.reshape(B, C, H, W).astype(orig_dtype)


def _reference(flow):
    """Pure-JAX reference (lax.conv) for correctness check."""
    kern = jnp.array(
        [[-3., 12., 17., 12., -3.],
         [0., -5., -20., -5., 0.],
         [4., 16., 26., 16., 4.],
         [0., -5., -20., -5., 0.],
         [-3., 12., 17., 12., -3.]], dtype=jnp.float32) / _KSUM
    k = kern.reshape(1, 1, 5, 5)
    B, C, H, W = flow.shape
    x = flow.astype(jnp.float32).reshape(B * C, 1, H, W)
    y = jax.lax.conv_general_dilated(
        x, k, window_strides=(1, 1), padding=((2, 2), (2, 2)),
        dimension_numbers=("NCHW", "OIHW", "NCHW"))
    return y.reshape(B, C, H, W)


if __name__ == "__main__":
    key = jax.random.PRNGKey(0)
    flow = jax.random.normal(key, (2, 2, 16, 16), dtype=jnp.float32)

    out = bspline_filter(flow)
    out = jax.block_until_ready(out)

    ref = _reference(flow)
    assert out.shape == (2, 2, 16, 16)
    assert jnp.allclose(out, ref, atol=1e-5, rtol=1e-5), "mismatch vs reference"

    print("KERNEL_OK")
</pallas_src>

<mosaic_0001>
module attributes {stable_mosaic.version = 11 : i64} {
  func.func @_bspline_conv_kernel(%arg0: i32, %arg1: memref<2x16x16xf32, #tpu.memory_space<vmem>>, %arg2: memref<2x16x16xf32, #tpu.memory_space<vmem>>, %arg3: memref<2x20x20xf32, #tpu.memory_space<vmem>>) attributes {dimension_semantics = [#tpu.dimension_semantics<parallel>], iteration_bounds = array<i64: 2>, scalar_prefetch = 0 : i64, scratch_operands = 1 : i64, tpu.core_type = #tpu.core_type<tc>, window_params = [{transform_indices = @transform_0, window_bounds = array<i64: 2, 16, 16>}, {transform_indices = @transform_1, window_bounds = array<i64: 2, 16, 16>}]} {
    %cst = arith.constant 0.000000e+00 : f32
    %0 = vector.broadcast %cst : f32 to vector<2x2x20xf32>
    %cst_0 = arith.constant 0.000000e+00 : f32
    %1 = vector.broadcast %cst_0 : f32 to vector<2x20x2xf32>
    %c0 = arith.constant 0 : index
    %c0_1 = arith.constant 0 : index
    %c0_2 = arith.constant 0 : index
    %2 = vector.load %arg3[%c0, %c0_1, %c0_2] : memref<2x20x20xf32, #tpu.memory_space<vmem>>, vector<2x2x20xf32>
    tpu.vector_store %arg3[%c0, %c0_1, %c0_2], %0 {strides = array<i32>} : memref<2x20x20xf32, #tpu.memory_space<vmem>>, vector<2x2x20xf32>,
    %c0_3 = arith.constant 0 : index
    %c18 = arith.constant 18 : index
    %c0_4 = arith.constant 0 : index
    %3 = vector.load %arg3[%c0_3, %c18, %c0_4] : memref<2x20x20xf32, #tpu.memory_space<vmem>>, vector<2x2x20xf32>
    tpu.vector_store %arg3[%c0_3, %c18, %c0_4], %0 {strides = array<i32>} : memref<2x20x20xf32, #tpu.memory_space<vmem>>, vector<2x2x20xf32>,
    %c0_5 = arith.constant 0 : index
    %c0_6 = arith.constant 0 : index
    %c0_7 = arith.constant 0 : index
    %4 = vector.load %arg3[%c0_5, %c0_6, %c0_7] : memref<2x20x20xf32, #tpu.memory_space<vmem>>, vector<2x20x2xf32>
    tpu.vector_store %arg3[%c0_5, %c0_6, %c0_7], %1 {strides = array<i32>} : memref<2x20x20xf32, #tpu.memory_space<vmem>>, vector<2x20x2xf32>,
    %c0_8 = arith.constant 0 : index
    %c0_9 = arith.constant 0 : index
    %c18_10 = arith.constant 18 : index
    %5 = vector.load %arg3[%c0_8, %c0_9, %c18_10] : memref<2x20x20xf32, #tpu.memory_space<vmem>>, vector<2x20x2xf32>
    tpu.vector_store %arg3[%c0_8, %c0_9, %c18_10], %1 {strides = array<i32>} : memref<2x20x20xf32, #tpu.memory_space<vmem>>, vector<2x20x2xf32>,
    %c0_11 = arith.constant 0 : index
    %c0_12 = arith.constant 0 : index
    %c0_13 = arith.constant 0 : index
    %6 = vector.load %arg1[%c0_11, %c0_12, %c0_13] : memref<2x16x16xf32, #tpu.memory_space<vmem>>, vector<2x16x16xf32>
    %c0_14 = arith.constant 0 : index
    %c2 = arith.constant 2 : index
    %c2_15 = arith.constant 2 : index
    %7 = vector.load %arg3[%c0_14, %c2, %c2_15] : memref<2x20x20xf32, #tpu.memory_space<vmem>>, vector<2x16x16xf32>
    tpu.vector_store %arg3[%c0_14, %c2, %c2_15], %6 {strides = array<i32>} : memref<2x20x20xf32, #tpu.memory_space<vmem>>, vector<2x16x16xf32>,
    %c0_16 = arith.constant 0 : index
    %c0_17 = arith.constant 0 : index
    %c0_18 = arith.constant 0 : index
    %8 = vector.load %arg3[%c0_16, %c0_17, %c0_18] : memref<2x20x20xf32, #tpu.memory_space<vmem>>, vector<2x20x20xf32>
    %9 = vector.extract_strided_slice %8 {offsets = [0, 0, 0], sizes = [2, 20, 16], strides = [1, 1, 1]} : vector<2x20x20xf32> to vector<2x20x16xf32>
    %10 = vector.extract_strided_slice %8 {offsets = [0, 0, 4], sizes = [2, 20, 16], strides = [1, 1, 1]} : vector<2x20x20xf32> to vector<2x20x16xf32>
    %11 = arith.addf %9, %10 : vector<2x20x16xf32>
    %12 = vector.extract_strided_slice %8 {offsets = [0, 0, 1], sizes = [2, 20, 16], strides = [1, 1, 1]} : vector<2x20x20xf32> to vector<2x20x16xf32>
    %13 = vector.extract_strided_slice %8 {offsets = [0, 0, 3], sizes = [2, 20, 16], strides = [1, 1, 1]} : vector<2x20x20xf32> to vector<2x20x16xf32>
    %14 = arith.addf %12, %13 : vector<2x20x16xf32>
    %15 = vector.extract_strided_slice %8 {offsets = [0, 0, 2], sizes = [2, 20, 16], strides = [1, 1, 1]} : vector<2x20x20xf32> to vector<2x20x16xf32>
    %16 = vector.extract_strided_slice %11 {offsets = [0, 0, 0], sizes = [2, 16, 16], strides = [1, 1, 1]} : vector<2x20x16xf32> to vector<2x16x16xf32>
    %17 = vector.extract_strided_slice %11 {offsets = [0, 4, 0], sizes = [2, 16, 16], strides = [1, 1, 1]} : vector<2x20x16xf32> to vector<2x16x16xf32>
    %18 = arith.addf %16, %17 : vector<2x16x16xf32>
    %19 = vector.extract_strided_slice %14 {offsets = [0, 0, 0], sizes = [2, 16, 16], strides = [1, 1, 1]} : vector<2x20x16xf32> to vector<2x16x16xf32>
    %20 = vector.extract_strided_slice %14 {offsets = [0, 4, 0], sizes = [2, 16, 16], strides = [1, 1, 1]} : vector<2x20x16xf32> to vector<2x16x16xf32>
    %21 = arith.addf %19, %20 : vector<2x16x16xf32>
    %22 = vector.extract_strided_slice %15 {offsets = [0, 0, 0], sizes = [2, 16, 16], strides = [1, 1, 1]} : vector<2x20x16xf32> to vector<2x16x16xf32>
    %23 = vector.extract_strided_slice %15 {offsets = [0, 4, 0], sizes = [2, 16, 16], strides = [1, 1, 1]} : vector<2x20x16xf32> to vector<2x16x16xf32>
    %24 = arith.addf %22, %23 : vector<2x16x16xf32>
    %25 = vector.extract_strided_slice %14 {offsets = [0, 1, 0], sizes = [2, 16, 16], strides = [1, 1, 1]} : vector<2x20x16xf32> to vector<2x16x16xf32>
    %26 = vector.extract_strided_slice %14 {offsets = [0, 3, 0], sizes = [2, 16, 16], strides = [1, 1, 1]} : vector<2x20x16xf32> to vector<2x16x16xf32>
    %27 = arith.addf %25, %26 : vector<2x16x16xf32>
    %28 = vector.extract_strided_slice %15 {offsets = [0, 1, 0], sizes = [2, 16, 16], strides = [1, 1, 1]} : vector<2x20x16xf32> to vector<2x16x16xf32>
    %29 = vector.extract_strided_slice %15 {offsets = [0, 3, 0], sizes = [2, 16, 16], strides = [1, 1, 1]} : vector<2x20x16xf32> to vector<2x16x16xf32>
    %30 = arith.addf %28, %29 : vector<2x16x16xf32>
    %31 = vector.extract_strided_slice %11 {offsets = [0, 2, 0], sizes = [2, 16, 16], strides = [1, 1, 1]} : vector<2x20x16xf32> to vector<2x16x16xf32>
    %32 = vector.extract_strided_slice %14 {offsets = [0, 2, 0], sizes = [2, 16, 16], strides = [1, 1, 1]} : vector<2x20x16xf32> to vector<2x16x16xf32>
    %33 = vector.extract_strided_slice %15 {offsets = [0, 2, 0], sizes = [2, 16, 16], strides = [1, 1, 1]} : vector<2x20x16xf32> to vector<2x16x16xf32>
    %cst_19 = arith.constant -0.0394736826 : f32
    %34 = vector.broadcast %cst_19 : f32 to vector<2x16x16xf32>
    %35 = arith.mulf %34, %18 : vector<2x16x16xf32>
    %cst_20 = arith.constant 0.157894731 : f32
    %36 = vector.broadcast %cst_20 : f32 to vector<2x16x16xf32>
    %37 = arith.mulf %36, %21 : vector<2x16x16xf32>
    %38 = arith.addf %35, %37 : vector<2x16x16xf32>
    %cst_21 = arith.constant 0.223684207 : f32
    %39 = vector.broadcast %cst_21 : f32 to vector<2x16x16xf32>
    %40 = arith.mulf %39, %24 : vector<2x16x16xf32>
    %41 = arith.addf %38, %40 : vector<2x16x16xf32>
    %cst_22 = arith.constant -0.065789476 : f32
    %42 = vector.broadcast %cst_22 : f32 to vector<2x16x16xf32>
    %43 = arith.mulf %42, %27 : vector<2x16x16xf32>
    %44 = arith.addf %41, %43 : vector<2x16x16xf32>
    %cst_23 = arith.constant -0.263157904 : f32
    %45 = vector.broadcast %cst_23 : f32 to vector<2x16x16xf32>
    %46 = arith.mulf %45, %30 : vector<2x16x16xf32>
    %47 = arith.addf %44, %46 : vector<2x16x16xf32>
    %cst_24 = arith.constant 0.0526315793 : f32
    %48 = vector.broadcast %cst_24 : f32 to vector<2x16x16xf32>
    %49 = arith.mulf %48, %31 : vector<2x16x16xf32>
    %50 = arith.addf %47, %49 : vector<2x16x16xf32>
    %cst_25 = arith.constant 0.210526317 : f32
    %51 = vector.broadcast %cst_25 : f32 to vector<2x16x16xf32>
    %52 = arith.mulf %51, %32 : vector<2x16x16xf32>
    %53 = arith.addf %50, %52 : vector<2x16x16xf32>
    %cst_26 = arith.constant 0.342105269 : f32
    %54 = vector.broadcast %cst_26 : f32 to vector<2x16x16xf32>
    %55 = arith.mulf %54, %33 : vector<2x16x16xf32>
    %56 = arith.addf %53, %55 : vector<2x16x16xf32>
    %c0_27 = arith.constant 0 : index
    %c0_28 = arith.constant 0 : index
    %c0_29 = arith.constant 0 : index
    %57 = vector.load %arg2[%c0_27, %c0_28, %c0_29] : memref<2x16x16xf32, #tpu.memory_space<vmem>>, vector<2x16x16xf32>
    tpu.vector_store %arg2[%c0_27, %c0_28, %c0_29], %56 {strides = array<i32>} : memref<2x16x16xf32, #tpu.memory_space<vmem>>, vector<2x16x16xf32>,
    return
  }
  func.func @transform_0(%arg0: i32) -> (i32, i32, i32) {
    %c0_i32 = arith.constant 0 : i32
    %c0_i32_0 = arith.constant 0 : i32
    %c0_i32_1 = arith.constant 0 : i32
    return %arg0, %c0_i32, %c0_i32_0 : i32, i32, i32
  }
  func.func @transform_1(%arg0: i32) -> (i32, i32, i32) {
    %c0_i32 = arith.constant 0 : i32
    %c0_i32_0 = arith.constant 0 : i32
    %c0_i32_1 = arith.constant 0 : i32
    return %arg0, %c0_i32, %c0_i32_0 : i32, i32, i32
  }
}

</mosaic_0001>

<llo_original>
// kernel: tpu_custom_call.1
$region0: #{tpu_custom_call.1}
  #allocation0 [shape = 'u32[]', space=smem, size = 0x4, offset = 0x4, fixed_abs, tag = 'smem constant byte address 0x4 - core index']
  #allocation1 [shape = 'u32[144,128]{1,0:T(1,128)}', space=vmem, size = 0x12000, scoped, tag = 'internal scratch']
  #allocation2 [shape = 'f32[2,20,20]{2,1,0:T(8,128)}', space=vmem, size = 0x6000, scoped, tag = 'scratch operand']
  %s0 = inlined_call_operand.hbm [shape: f32[4,16,16], index: 0, kind: input, shape index: {}]
  %s1 = inlined_call_operand.hbm [shape: f32[4,16,16], index: 1, kind: output, shape index: {}]
  %s2 = sld [smem:[#allocation0]]
  $region41: #{tpu_custom_call.1} parent=0
    _
  %s4 = ssub.s32 1, %s2
  %s5 = scalar_select 0, %s4, %s2
  $region1: #{tpu_custom_call.1} parent=0
    #allocation3 [shape = 'u8[32768]{0}', space=vmem, size = 0x8000, scoped, tag = 'input window, operand 0']
    #allocation4 [shape = 's32[2]{0}', space=sflag, size = 0x8, scoped, tag = 'scoped memory for tpu_custom_call.1']
    #allocation5 [shape = 's32[2]{0}', space=sflag, size = 0x8, scoped, tag = 'scoped memory for tpu_custom_call.1']
    #allocation6 [shape = 'u8[32768]{0}', space=vmem, size = 0x8000, scoped, tag = 'output window, operand 0']
    %6 = vsyncpa [#allocation4], 0
    %s7 = scalar_lea.sflag [#allocation4], 1
    %8 = vsyncpa %s7, 0
    %9 = vsyncpa [#allocation5], 0
    %s10 = scalar_lea.sflag [#allocation5], 1
    %11 = vsyncpa %s10, 0
    loop: start=0, step=1, limit=4
    $region2: #{tpu_custom_call.1} parent=1 // loop_pre_header
      _
    $region3: #{tpu_custom_call.1} parent=1 // loop_header
      %s13 = sphi 0, %s17
      %p14 = scmp.ge.s32.totalorder %s13, 4
      %s23 = sphi 0, %s25
      %s26 = sphi 0, %s23
      %s27 = sphi 0, %s26
      %s43 = sphi 0, %s27
      %s49 = sphi 0, %s51
      %s52 = sphi 0, %s49
      %s53 = sphi 0, %s52
      %s69 = sphi 0, %s53
    $region4: #{tpu_custom_call.1} parent=1 // loop_header_branch
      %16 = sbr.rel (%p14) target = $region8
    $region5: #{tpu_custom_call.1} parent=1 // loop_body
      %s18 = ssub.s32 %s13, 1
      %s19 = ssub.s32 %s13, 2
      %s20 = sadd.s32 %s13, 1
      %s21 = ssub.s32 %s13, %s20
      %p22 = scmp.eq.s32.totalorder %s21, 0
      %s24 = sadd.s32 %s23, 1
      %s25 = scalar_select %p22, %s23, %s24
      %p28 = pneg %p22
      %p29 = scmp.eq.s32.totalorder %s13, 1
      %p30 = por %p28, %p29
      %p31 = scmp.ne.s32.totalorder %s23, %s26
      %p32 = scmp.eq.s32.totalorder %s13, 0
      %p33 = por %p31, %p32
      %p34 = scmp.ne.s32.totalorder %s23, %s26
      %p35 = scmp.eq.s32.totalorder %s18, 1
      %p36 = por %p34, %p35
      %p37 = scmp.ne.s32.totalorder %s26, %s27
      %p38 = scmp.eq.s32.totalorder %s18, 0
      %p39 = por %p37, %p38
      %p40 = scmp.ne.s32.totalorder %s26, %s27
      %p41 = scmp.eq.s32.totalorder %s19, 1
      %p42 = por %p40, %p41
      %p44 = scmp.ne.s32.totalorder %s27, %s43
      %p45 = scmp.eq.s32.totalorder %s19, 0
      %p46 = por %p44, %p45
      %s47 = ssub.s32 %s13, %s20
      %p48 = scmp.eq.s32.totalorder %s47, 0
      %s50 = sadd.s32 %s49, 1
      %s51 = scalar_select %p48, %s49, %s50
      %p54 = pneg %p48
      %p55 = scmp.eq.s32.totalorder %s13, 1
      %p56 = por %p54, %p55
      %p57 = scmp.ne.s32.totalorder %s49, %s52
      %p58 = scmp.eq.s32.totalorder %s13, 0
      %p59 = por %p57, %p58
      %p60 = scmp.ne.s32.totalorder %s49, %s52
      %p61 = scmp.eq.s32.totalorder %s18, 1
      %p62 = por %p60, %p61
      %p63 = scmp.ne.s32.totalorder %s52, %s53
      %p64 = scmp.eq.s32.totalorder %s18, 0
      %p65 = por %p63, %p64
      %p66 = scmp.ne.s32.totalorder %s52, %s53
      %p67 = scmp.eq.s32.totalorder %s19, 1
      %p68 = por %p66, %p67
      %p70 = scmp.ne.s32.totalorder %s53, %s69
      %p71 = scmp.eq.s32.totalorder %s19, 0
      %p72 = por %p70, %p71
      %p73 = scmp.le.s32.totalorder 1, %s13
      %p74 = scmp.lt.s32.totalorder %s13, 3
      %p75 = pnand %p73, %p74
      %p76 = pneg %p75
      // Predicated region
      $region9: #{tpu_custom_call.1} parent=5 // pred_check
        _
      $region10: #{tpu_custom_call.1} parent=5 // pred_check_branch
        %78 = sbr.rel (%p75) target = $region12
      $region11: #{tpu_custom_call.1} parent=5 // pred_region
        %s79 = ssub.s32 %s13, 1
      $region12: #{tpu_custom_call.1} parent=5 // pred_fallthru
        _
      %p80 = scmp.lt.s32.totalorder %s13, 2
      // Predicated region
      $region13: #{tpu_custom_call.1} parent=5 // pred_check
        %p81 = pneg %p80
      $region14: #{tpu_custom_call.1} parent=5 // pred_check_branch
        %83 = sbr.rel (%p81) target = $region16
      $region15: #{tpu_custom_call.1} parent=5 // pred_region
        // Predicated region
        $region17: #{tpu_custom_call.1} parent=15 // pred_check
          %p84 = pneg %p33
        $region18: #{tpu_custom_call.1} parent=15 // pred_check_branch
          %86 = sbr.rel (%p84) target = $region20
        $region19: #{tpu_custom_call.1} parent=15 // pred_region
          %s87 = sand.u32 %s23, 1
          %s88 = scalar_lea.sflag [#allocation4], %s87
          %s89 = sand.u32 %s23, 1
          %s90 = smul.addr %s89, 32
          %s91 = scalar_lea.vmem [#allocation3], %s90
          %s92 = smul.u32 2, %s13
          %s94 = ssub.s32 512, 512
          %95 = vsyncadd %s88, %s94
          %s96 = smul.addr %s92, 2
          %s97 = smul.addr %s96, 128
          %s98 = scalar_lea.hbm %s0, %s97
          %s99 = sshll.u32 %s91, 4
          %s100 = int_to_ptr.vmem [resolvable:$true] %s99
          %105 = dma.hbm_to_vmem [thread:$0]  %s98, 512, %s100, %s88, 128, 128, 8
        $region20: #{tpu_custom_call.1} parent=15 // pred_fallthru
          _
      $region16: #{tpu_custom_call.1} parent=5 // pred_fallthru
        _
      %p106 = scmp.le.s32.totalorder 1, %s13
      %p107 = scmp.lt.s32.totalorder %s13, 3
      %p108 = pnand %p106, %p107
      %p109 = pneg %p108
      // Predicated region
      $region21: #{tpu_custom_call.1} parent=5 // pred_check
        _
      $region22: #{tpu_custom_call.1} parent=5 // pred_check_branch
        %111 = sbr.rel (%p108) target = $region24
      $region23: #{tpu_custom_call.1} parent=5 // pred_region
        %s112 = ssub.s32 %s13, 1
        %s113 = sand.u32 %s26, 1
        %s114 = scalar_lea.sflag [#allocation4], %s113
        %s115 = sand.u32 %s26, 1
        %s116 = smul.addr %s115, 32
        %s117 = scalar_lea.vmem [#allocation3], %s116
        // Predicated region
        $region25: #{tpu_custom_call.1} parent=23 // pred_check
          %p118 = pneg %p39
        $region26: #{tpu_custom_call.1} parent=23 // pred_check_branch
          %120 = sbr.rel (%p118) target = $region28
        $region27: #{tpu_custom_call.1} parent=23 // pred_region
          %121 = dma.done %s114, 512
        $region28: #{tpu_custom_call.1} parent=23 // pred_fallthru
          _
        %s122 = sand.u32 %s26, 1
        %s123 = scalar_lea.sflag [#allocation4], %s122
        %s124 = sand.u32 %s26, 1
        %s125 = smul.addr %s124, 32
        %s126 = scalar_lea.vmem [#allocation3], %s125
        %p127 = pneg %p39
        %p128 = pneg %p36
        %p129 = pneg %p65
        %p130 = pneg %p62
        %s131 = sand.u32 %s52, 1
        %s132 = scalar_lea.sflag [#allocation5], %s131
        %s133 = sand.u32 %s52, 1
        %s134 = smul.addr %s133, 32
        %s135 = scalar_lea.vmem [#allocation6], %s134
        %s136 = smul.u32 2, %s18
        %s137 = smul.u32 2, %s18
        %vm138 = vcmask 156672
        %139 = vst.msk [vmem:[#allocation2] sm:$0x3] %vm138, 0.0
        %140 = vst.msk [vmem:[#allocation2 + $0x18] sm:$0x3] %vm138, 0.0
        %141 = vst.msk [vmem:[#allocation2 + $0x12] sm:$0x3] %vm138, 0.0
        %142 = vst.msk [vmem:[#allocation2 + $0x2a] sm:$0x3] %vm138, 0.0
        %vm143 = vcmask 15360
        %144 = vst.msk [vmem:[#allocation2] sm:$0xff] %vm143, 0.0
        %145 = vst.msk [vmem:[#allocation2 + $0x8] sm:$0xff] %vm143, 0.0
        %vm146 = vcmask 11264
        %147 = vst.msk [vmem:[#allocation2 + $0x10] sm:$0xf] %vm146, 0.0
        %148 = vst.msk [vmem:[#allocation2 + $0x18] sm:$0xff] %vm143, 0.0
        %149 = vst.msk [vmem:[#allocation2 + $0x20] sm:$0xff] %vm143, 0.0
        %150 = vst.msk [vmem:[#allocation2 + $0x28] sm:$0xf] %vm146, 0.0
        %vm151 = vcmask 162960
        %152 = vst.msk [vmem:[#allocation2] sm:$0xff] %vm151, 0.0
        %153 = vst.msk [vmem:[#allocation2 + $0x8] sm:$0xff] %vm151, 0.0
        %vm154 = vcmask 158864
        %155 = vst.msk [vmem:[#allocation2 + $0x10] sm:$0xf] %vm154, 0.0
        %156 = vst.msk [vmem:[#allocation2 + $0x18] sm:$0xff] %vm151, 0.0
        %157 = vst.msk [vmem:[#allocation2 + $0x20] sm:$0xff] %vm151, 0.0
        %158 = vst.msk [vmem:[#allocation2 + $0x28] sm:$0xf] %vm154, 0.0
        %v159 = vld [vmem:[%s117] sm:$0xff]
        %v160 = vld [vmem:[%s117 + $0x8] sm:$0xff]
        %v161 = vld [vmem:[%s117 + $0x10] sm:$0xff]
        %v162 = vld [vmem:[%s117 + $0x18] sm:$0xff]
        %167 = vrot.lane.b32.xlu0 %v159, 2
        %v168 = vpop.permute.xlu0 %167
        %169 = vrot.lane.b32.xlu0 %v160, 2
        %v170 = vpop.permute.xlu0 %169
        %171 = vrot.lane.b32.xlu0 %v161, 2
        %v172 = vpop.permute.xlu0 %171
        %173 = vrot.lane.b32.xlu0 %v162, 2
        %v174 = vpop.permute.xlu0 %173
        %vm179 = vcmask 146448
        %180 = vst.msk [vmem:[#allocation2 + $0x2] sm:$0xff] %vm179, %v168
        %181 = vst.msk [vmem:[#allocation2 + $0xa] sm:$0xff] %vm179, %v170
        %182 = vst.msk [vmem:[#allocation2 + $0x1a] sm:$0xff] %vm179, %v172
        %183 = vst.msk [vmem:[#allocation2 + $0x22] sm:$0xff] %vm179, %v174
        %v184 = vld [vmem:[#allocation2] sm:$0xff]
        %v185 = vld [vmem:[#allocation2 + $0x8] sm:$0xff]
        %v186 = vld [vmem:[#allocation2 + $0x10] sm:$0xf]
        %v187 = vld [vmem:[#allocation2 + $0x18] sm:$0xff]
        %v188 = vld [vmem:[#allocation2 + $0x20] sm:$0xff]
        %v189 = vld [vmem:[#allocation2 + $0x28] sm:$0xf]
        %196 = vrot.lane.b32.xlu0 %v184, 124
        %v197 = vpop.permute.xlu0 %196
        %198 = vrot.lane.b32.xlu0 %v185, 124
        %v199 = vpop.permute.xlu0 %198
        %200 = vrot.lane.b32.xlu0 %v186, 124
        %v201 = vpop.permute.xlu0 %200
        %202 = vrot.lane.b32.xlu0 %v187, 124
        %v203 = vpop.permute.xlu0 %202
        %204 = vrot.lane.b32.xlu0 %v188, 124
        %v205 = vpop.permute.xlu0 %204
        %206 = vrot.lane.b32.xlu0 %v189, 124
        %v207 = vpop.permute.xlu0 %206
        %v214 = vadd.f32 %v184, %v197
        %v215 = vadd.f32 %v185, %v199
        %v216 = vadd.f32 %v186, %v201
        %v217 = vadd.f32 %v187, %v203
        %v218 = vadd.f32 %v188, %v205
        %v219 = vadd.f32 %v189, %v207
        %220 = vrot.lane.b32.xlu0 %v184, 126
        %v221 = vpop.permute.xlu0 %220
        %222 = vrot.lane.b32.xlu0 %v185, 126
        %v223 = vpop.permute.xlu0 %222
        %224 = vrot.lane.b32.xlu0 %v186, 126
        %v225 = vpop.permute.xlu0 %224
        %226 = vrot.lane.b32.xlu0 %v187, 126
        %v227 = vpop.permute.xlu0 %226
        %228 = vrot.lane.b32.xlu0 %v188, 126
        %v229 = vpop.permute.xlu0 %228
        %230 = vrot.lane.b32.xlu0 %v189, 126
        %v231 = vpop.permute.xlu0 %230
        %v238 = vadd.f32 %v184, %v221
        %v239 = vadd.f32 %v185, %v223
        %v240 = vadd.f32 %v186, %v225
        %v241 = vadd.f32 %v187, %v227
        %v242 = vadd.f32 %v188, %v229
        %v243 = vadd.f32 %v189, %v231
        %vm250 = vcmask 1043456
        %v251 = vrot.slane %v214, 4
        %v252 = vrot.slane %v215, 4
        %v253 = vsel %vm250, %v251, %v252
        %v254 = vrot.slane %v216, 4
        %v255 = vsel %vm250, %v252, %v254
        %v256 = vrot.slane %v217, 4
        %v257 = vrot.slane %v218, 4
        %v258 = vsel %vm250, %v256, %v257
        %v259 = vrot.slane %v219, 4
        %v260 = vsel %vm250, %v257, %v259
        %v265 = vadd.f32 %v214, %v253
        %v266 = vadd.f32 %v215, %v255
        %v267 = vadd.f32 %v217, %v258
        %v268 = vadd.f32 %v218, %v260
        %v275 = vrot.slane %v238, 4
        %v276 = vrot.slane %v239, 4
        %v277 = vsel %vm250, %v275, %v276
        %v278 = vrot.slane %v240, 4
        %v279 = vsel %vm250, %v276, %v278
        %v280 = vrot.slane %v241, 4
        %v281 = vrot.slane %v242, 4
        %v282 = vsel %vm250, %v280, %v281
        %v283 = vrot.slane %v243, 4
        %v284 = vsel %vm250, %v281, %v283
        %v289 = vadd.f32 %v238, %v277
        %v290 = vadd.f32 %v239, %v279
        %v291 = vadd.f32 %v241, %v282
        %v292 = vadd.f32 %v242, %v284
        %v293 = vrot.slane %v184, 4
        %v294 = vrot.slane %v185, 4
        %v295 = vsel %vm250, %v293, %v294
        %v296 = vrot.slane %v186, 4
        %v297 = vsel %vm250, %v294, %v296
        %v298 = vrot.slane %v187, 4
        %v299 = vrot.slane %v188, 4
        %v300 = vsel %vm250, %v298, %v299
        %v301 = vrot.slane %v189, 4
        %v302 = vsel %vm250, %v299, %v301
        %v307 = vadd.f32 %v184, %v295
        %v308 = vadd.f32 %v185, %v297
        %v309 = vadd.f32 %v187, %v300
        %v310 = vadd.f32 %v188, %v302
        %vm311 = vcmask 1045504
        %v312 = vrot.slane %v238, 2
        %v313 = vrot.slane %v239, 2
        %v314 = vsel %vm311, %v312, %v313
        %v315 = vrot.slane %v240, 2
        %v316 = vsel %vm311, %v313, %v315
        %v317 = vrot.slane %v241, 2
        %v318 = vrot.slane %v242, 2
        %v319 = vsel %vm311, %v317, %v318
        %v320 = vrot.slane %v243, 2
        %v321 = vsel %vm311, %v318, %v320
        %v328 = vadd.f32 %v238, %v314
        %v329 = vadd.f32 %v239, %v316
        %v330 = vadd.f32 %v240, %v315
        %v331 = vadd.f32 %v241, %v319
        %v332 = vadd.f32 %v242, %v321
        %v333 = vadd.f32 %v243, %v320
        %v334 = vrot.slane %v184, 2
        %v335 = vrot.slane %v185, 2
        %v336 = vsel %vm311, %v334, %v335
        %v337 = vrot.slane %v186, 2
        %v338 = vsel %vm311, %v335, %v337
        %v339 = vrot.slane %v187, 2
        %v340 = vrot.slane %v188, 2
        %v341 = vsel %vm311, %v339, %v340
        %v342 = vrot.slane %v189, 2
        %v343 = vsel %vm311, %v340, %v342
        %v350 = vadd.f32 %v184, %v336
        %v351 = vadd.f32 %v185, %v338
        %v352 = vadd.f32 %v186, %v337
        %v353 = vadd.f32 %v187, %v341
        %v354 = vadd.f32 %v188, %v343
        %v355 = vadd.f32 %v189, %v342
        %v356 = vmul.f32 %v265, -0.039473683
        %v357 = vmul.f32 %v266, -0.039473683
        %v358 = vmul.f32 %v267, -0.039473683
        %v359 = vmul.f32 %v268, -0.039473683
        %v360 = vmul.f32 %v289, 0.15789473
        %v361 = vmul.f32 %v290, 0.15789473
        %v362 = vmul.f32 %v291, 0.15789473
        %v363 = vmul.f32 %v292, 0.15789473
        %368 = vrot.lane.b32.xlu0 %v360, 127
        %v369 = vpop.permute.xlu0 %368
        %370 = vrot.lane.b32.xlu0 %v361, 127
        %v371 = vpop.permute.xlu0 %370
        %372 = vrot.lane.b32.xlu0 %v362, 127
        %v373 = vpop.permute.xlu0 %372
        %374 = vrot.lane.b32.xlu0 %v363, 127
        %v375 = vpop.permute.xlu0 %374
        %v380 = vadd.f32 %v356, %v369
        %v381 = vadd.f32 %v357, %v371
        %v382 = vadd.f32 %v358, %v373
        %v383 = vadd.f32 %v359, %v375
        %v384 = vmul.f32 %v307, 0.2236842
        %v385 = vmul.f32 %v308, 0.2236842
        %v386 = vmul.f32 %v309, 0.2236842
        %v387 = vmul.f32 %v310, 0.2236842
        %392 = vrot.lane.b32.xlu0 %v384, 126
        %v393 = vpop.permute.xlu0 %392
        %394 = vrot.lane.b32.xlu0 %v385, 126
        %v395 = vpop.permute.xlu0 %394
        %396 = vrot.lane.b32.xlu0 %v386, 126
        %v397 = vpop.permute.xlu0 %396
        %398 = vrot.lane.b32.xlu0 %v387, 126
        %v399 = vpop.permute.xlu0 %398
        %v404 = vadd.f32 %v380, %v393
        %v405 = vadd.f32 %v381, %v395
        %v406 = vadd.f32 %v382, %v397
        %v407 = vadd.f32 %v383, %v399
        %v408 = vmul.f32 %v328, -0.065789476
        %v409 = vmul.f32 %v329, -0.065789476
        %v410 = vmul.f32 %v330, -0.065789476
        %v411 = vmul.f32 %v331, -0.065789476
        %v412 = vmul.f32 %v332, -0.065789476
        %v413 = vmul.f32 %v333, -0.065789476
        %vm420 = vcmask 1046528
        %v421 = vrot.slane %v408, 1
        %v422 = vrot.slane %v409, 1
        %v423 = vsel %vm420, %v421, %v422
        %v424 = vrot.slane %v410, 1
        %v425 = vsel %vm420, %v422, %v424
        %v426 = vrot.slane %v411, 1
        %v427 = vrot.slane %v412, 1
        %v428 = vsel %vm420, %v426, %v427
        %v429 = vrot.slane %v413, 1
        %v430 = vsel %vm420, %v427, %v429
        %431 = vrot.lane.b32.xlu0 %v423, 127
        %v432 = vpop.permute.xlu0 %431
        %433 = vrot.lane.b32.xlu0 %v425, 127
        %v434 = vpop.permute.xlu0 %433
        %435 = vrot.lane.b32.xlu0 %v428, 127
        %v436 = vpop.permute.xlu0 %435
        %437 = vrot.lane.b32.xlu0 %v430, 127
        %v438 = vpop.permute.xlu0 %437
        %v443 = vadd.f32 %v404, %v432
        %v444 = vadd.f32 %v405, %v434
        %v445 = vadd.f32 %v406, %v436
        %v446 = vadd.f32 %v407, %v438
        %v447 = vmul.f32 %v350, -0.2631579
        %v448 = vmul.f32 %v351, -0.2631579
        %v449 = vmul.f32 %v352, -0.2631579
        %v450 = vmul.f32 %v353, -0.2631579
        %v451 = vmul.f32 %v354, -0.2631579
        %v452 = vmul.f32 %v355, -0.2631579
        %v459 = vrot.slane %v447, 1
        %v460 = vrot.slane %v448, 1
        %v461 = vsel %vm420, %v459, %v460
        %v462 = vrot.slane %v449, 1
        %v463 = vsel %vm420, %v460, %v462
        %v464 = vrot.slane %v450, 1
        %v465 = vrot.slane %v451, 1
        %v466 = vsel %vm420, %v464, %v465
        %v467 = vrot.slane %v452, 1
        %v468 = vsel %vm420, %v465, %v467
        %469 = vrot.lane.b32.xlu0 %v461, 126
        %v470 = vpop.permute.xlu0 %469
        %471 = vrot.lane.b32.xlu0 %v463, 126
        %v472 = vpop.permute.xlu0 %471
        %473 = vrot.lane.b32.xlu0 %v466, 126
        %v474 = vpop.permute.xlu0 %473
        %475 = vrot.lane.b32.xlu0 %v468, 126
        %v476 = vpop.permute.xlu0 %475
        %v481 = vadd.f32 %v443, %v470
        %v482 = vadd.f32 %v444, %v472
        %v483 = vadd.f32 %v445, %v474
        %v484 = vadd.f32 %v446, %v476
        %v485 = vmul.f32 %v214, 0.05263158
        %v486 = vmul.f32 %v215, 0.05263158
        %v487 = vmul.f32 %v216, 0.05263158
        %v488 = vmul.f32 %v217, 0.05263158
        %v489 = vmul.f32 %v218, 0.05263158
        %v490 = vmul.f32 %v219, 0.05263158
        %v497 = vrot.slane %v485, 2
        %v498 = vrot.slane %v486, 2
        %v499 = vsel %vm311, %v497, %v498
        %v500 = vrot.slane %v487, 2
        %v501 = vsel %vm311, %v498, %v500
        %v502 = vrot.slane %v488, 2
        %v503 = vrot.slane %v489, 2
        %v504 = vsel %vm311, %v502, %v503
        %v505 = vrot.slane %v490, 2
        %v506 = vsel %vm311, %v503, %v505
        %v511 = vadd.f32 %v481, %v499
        %v512 = vadd.f32 %v482, %v501
        %v513 = vadd.f32 %v483, %v504
        %v514 = vadd.f32 %v484, %v506
        %v515 = vmul.f32 %v238, 0.21052632
        %v516 = vmul.f32 %v239, 0.21052632
        %v517 = vmul.f32 %v240, 0.21052632
        %v518 = vmul.f32 %v241, 0.21052632
        %v519 = vmul.f32 %v242, 0.21052632
        %v520 = vmul.f32 %v243, 0.21052632
        %v527 = vrot.slane %v515, 2
        %v528 = vrot.slane %v516, 2
        %v529 = vsel %vm311, %v527, %v528
        %v530 = vrot.slane %v517, 2
        %v531 = vsel %vm311, %v528, %v530
        %v532 = vrot.slane %v518, 2
        %v533 = vrot.slane %v519, 2
        %v534 = vsel %vm311, %v532, %v533
        %v535 = vrot.slane %v520, 2
        %v536 = vsel %vm311, %v533, %v535
        %537 = vrot.lane.b32.xlu0 %v529, 127
        %v538 = vpop.permute.xlu0 %537
        %539 = vrot.lane.b32.xlu0 %v531, 127
        %v540 = vpop.permute.xlu0 %539
        %541 = vrot.lane.b32.xlu0 %v534, 127
        %v542 = vpop.permute.xlu0 %541
        %543 = vrot.lane.b32.xlu0 %v536, 127
        %v544 = vpop.permute.xlu0 %543
        %v549 = vadd.f32 %v511, %v538
        %v550 = vadd.f32 %v512, %v540
        %v551 = vadd.f32 %v513, %v542
        %v552 = vadd.f32 %v514, %v544
        %v553 = vmul.f32 %v184, 0.34210527
        %v554 = vmul.f32 %v185, 0.34210527
        %v555 = vmul.f32 %v186, 0.34210527
        %v556 = vmul.f32 %v187, 0.34210527
        %v557 = vmul.f32 %v188, 0.34210527
        %v558 = vmul.f32 %v189, 0.34210527
        %v565 = vrot.slane %v553, 2
        %v566 = vrot.slane %v554, 2
        %v567 = vsel %vm311, %v565, %v566
        %v568 = vrot.slane %v555, 2
        %v569 = vsel %vm311, %v566, %v568
        %v570 = vrot.slane %v556, 2
        %v571 = vrot.slane %v557, 2
        %v572 = vsel %vm311, %v570, %v571
        %v573 = vrot.slane %v558, 2
        %v574 = vsel %vm311, %v571, %v573
        %575 = vrot.lane.b32.xlu0 %v567, 126
        %v576 = vpop.permute.xlu0 %575
        %577 = vrot.lane.b32.xlu0 %v569, 126
        %v578 = vpop.permute.xlu0 %577
        %579 = vrot.lane.b32.xlu0 %v572, 126
        %v580 = vpop.permute.xlu0 %579
        %581 = vrot.lane.b32.xlu0 %v574, 126
        %v582 = vpop.permute.xlu0 %581
        %v587 = vadd.f32 %v549, %v576
        %v588 = vadd.f32 %v550, %v578
        %v589 = vadd.f32 %v551, %v580
        %v590 = vadd.f32 %v552, %v582
        %vm591 = vcmask 130048
        %592 = vst.msk [vmem:[%s135] sm:$0xff] %vm591, %v587
        %593 = vst.msk [vmem:[%s135 + $0x8] sm:$0xff] %vm591, %v588
        %594 = vst.msk [vmem:[%s135 + $0x10] sm:$0xff] %vm591, %v589
        %595 = vst.msk [vmem:[%s135 + $0x18] sm:$0xff] %vm591, %v590
        %s596 = sand.u32 %s52, 1
        %s597 = scalar_lea.sflag [#allocation5], %s596
        %s598 = sand.u32 %s52, 1
        %s599 = smul.addr %s598, 32
        %s600 = scalar_lea.vmem [#allocation6], %s599
        // Predicated region
        $region29: #{tpu_custom_call.1} parent=23 // pred_check
          %p601 = pneg %p62
        $region30: #{tpu_custom_call.1} parent=23 // pred_check_branch
          %603 = sbr.rel (%p601) target = $region32
        $region31: #{tpu_custom_call.1} parent=23 // pred_region
          %s604 = smul.u32 2, %s18
          %s606 = ssub.s32 512, 512
          %607 = vsyncadd %s597, %s606
          %s608 = smul.addr %s604, 2
          %s609 = smul.addr %s608, 128
          %s610 = scalar_lea.hbm %s1, %s609
          %s611 = sshll.u32 %s600, 4
          %s612 = int_to_ptr.vmem [resolvable:$true] %s611
          %617 = dma.vmem_to_hbm [thread:$0]  %s612, 512, %s610, %s597, 128, 128, 8
        $region32: #{tpu_custom_call.1} parent=23 // pred_fallthru
          _
      $region24: #{tpu_custom_call.1} parent=5 // pred_fallthru
        _
      %p618 = scmp.le.s32.totalorder 2, %s13
      // Predicated region
      $region33: #{tpu_custom_call.1} parent=5 // pred_check
        %p619 = pneg %p618
      $region34: #{tpu_custom_call.1} parent=5 // pred_check_branch
        %621 = sbr.rel (%p619) target = $region36
      $region35: #{tpu_custom_call.1} parent=5 // pred_region
        %s622 = ssub.s32 %s13, 2
        // Predicated region
        $region37: #{tpu_custom_call.1} parent=35 // pred_check
          %p623 = pneg %p68
        $region38: #{tpu_custom_call.1} parent=35 // pred_check_branch
          %625 = sbr.rel (%p623) target = $region40
        $region39: #{tpu_custom_call.1} parent=35 // pred_region
          %s626 = sand.u32 %s53, 1
          %s627 = scalar_lea.sflag [#allocation5], %s626
          %s628 = sand.u32 %s53, 1
          %s629 = smul.addr %s628, 32
          %s630 = scalar_lea.vmem [#allocation6], %s629
          %631 = dma.done %s627, 512
        $region40: #{tpu_custom_call.1} parent=35 // pred_fallthru
          _
      $region36: #{tpu_custom_call.1} parent=5 // pred_fallthru
        _
    $region6: #{tpu_custom_call.1} parent=1 // loop_footer
      %s17 = sadd.s32 1, %s13
    $region7: #{tpu_custom_call.1} parent=1 // loop_footer_branch
      %12 = sbr.rel target = $region3
    $region8: #{tpu_custom_call.1} parent=1 // loop_exit
      _
    %632 = vsyncpa [#allocation4], 1
    %s633 = scalar_lea.sflag [#allocation4], 1
    %634 = vsyncpa %s633, 1
    %635 = vsyncpa [#allocation5], 1
    %s636 = scalar_lea.sflag [#allocation5], 1
    %637 = vsyncpa %s636, 1

</llo_original>
